<compile_context>
chip_gen: v6e
topology: v6e:2x2x1
jax: 0.10.0
libtpu: 0.0.40
codegen_flags: <defaults>
</compile_context>

<pallas_src>
import jax
import jax.numpy as jnp
from jax.experimental import pallas as pl
from jax.experimental.pallas import tpu as pltpu


def _round_up(x, m):
    return (x + m - 1) // m * m


def film_kernel(film_ref, tbf_ref, wf_ref, bg_ref, wo_ref, c_ref, out_ref):
    d_pad = wf_ref.shape[0]                       # padded feature dim (mult of 128)

    # film may arrive as f32 (unpadded fast path) or bf16 (padded path).
    film = film_ref[...].astype(jnp.bfloat16)

    # Fused [W_gamma | W_beta @ W_out] projection: one MXU pass, f32 accumulate.
    gb = jnp.dot(film, wf_ref[...], preferred_element_type=jnp.float32)  # (TB, Dp+Op)

    gamma = gb[:, :d_pad] + bg_ref[...]           # (TB, Dp) f32, static 128-aligned slice
    skip = gb[:, d_pad:]                          # (TB, Op) f32  == film @ (W_beta @ W_out)

    # FiLM modulation in f32 (to_be_film is kept f32 for precision; v5e has no
    # bf16 VPU path).
    modulated = gamma * tbf_ref[...].astype(jnp.float32)                 # (TB, Dp)

    # Output projection on the MXU; beta path + biases added as one VPU pass.
    out = jnp.dot(modulated.astype(jnp.bfloat16), wo_ref[...],
                  preferred_element_type=jnp.float32)                    # (TB, Op)
    out = out + skip + c_ref[...]
    out_ref[...] = out.astype(out_ref.dtype)


def film_forward(x, y, params, output_dim, x_film=True, out_dtype=None):
    """Pure-JAX wrapper around the Pallas kernel. Returns (x, y, output)."""
    if x_film:
        film, to_be_film = x, y
    else:
        film, to_be_film = y, x

    wf, bg, wo, c = params                        # padded / pre-transposed / beta-folded
    B, D = film.shape
    Dp, Op = wo.shape                             # padded D, padded O (mults of 128)
    out_dtype = out_dtype or film.dtype           # pass jnp.bfloat16 to halve writeback

    Bp = _round_up(B, 16)                         # keep Bp - B <= 16 (no over-padding)
    need_pad = (Bp, Dp) != (B, D)

    # --- per-generation VMEM budget -------------------------------------------------
    try:
        info = pltpu.get_tpu_info()
        phys_vmem = int(getattr(info, "vmem_capacity_bytes", 64 * 1024 * 1024))
    except Exception:
        phys_vmem = 64 * 1024 * 1024              # conservative (v7x per-TC) fallback
    vmem_cap = int(phys_vmem * 0.85)              # ~108 MiB v5e/v6e, ~54 MiB v7x

    film_bytes = 2 if need_pad else film.dtype.itemsize
    tbf_bytes = to_be_film.dtype.itemsize
    out_bytes = jnp.dtype(out_dtype).itemsize

    def working_set(tb):
        weights = Dp * (Dp + Op) * 2 + Dp * Op * 2 + (Dp + Op) * 4   # single-buffered
        tiles = 2 * tb * Dp * film_bytes + 2 * tb * Dp * tbf_bytes + 2 * tb * Op * out_bytes
        temps = tb * (Dp + Op) * 4 + tb * Dp * 6                     # gb + modulated + bf16 copy
        return weights + tiles + temps

    # --- batch tile selection --------------------------------------------------------
    if Bp <= 64:
        min_steps = 1
    elif Bp <= 256:
        min_steps = 2          # >= 2 grid steps so v7x's two TensorCores both get work
    else:
        min_steps = 4          # enough steps for DMA/compute overlap

    TB = 16                    # always divides Bp (fallback)
    for t in range(16, min(Bp, 512) + 1, 16):
        if Bp % t == 0 and Bp // t >= min_steps and working_set(t) <= vmem_cap:
            TB = t
    grid = (Bp // TB,)

    vmem_limit = min(max(int(working_set(TB) * 1.25) + (2 << 20), 16 << 20), vmem_cap)

    # --- activations: pad/cast only when needed --------------------------------------
    if need_pad:
        film_p = jnp.pad(film.astype(jnp.bfloat16), ((0, Bp - B), (0, Dp - D)))
        tbf_p = jnp.pad(to_be_film, ((0, Bp - B), (0, Dp - D)))      # keep f32 (precision)
    else:
        film_p = film          # bf16 cast happens in-kernel; no wrapper round-trip
        tbf_p = to_be_film

    # --- cost estimate ----------------------------------------------------------------
    flops = 2 * Bp * Dp * (Dp + Op) + 2 * Bp * Dp * Op
    bytes_accessed = (
        film_p.size * film_p.dtype.itemsize
        + tbf_p.size * tbf_p.dtype.itemsize
        + wf.size * 2 + wo.size * 2
        + (bg.size + c.size) * 4
        + Bp * Op * out_bytes
    )
    cost = pl.CostEstimate(flops=flops, transcendentals=0, bytes_accessed=bytes_accessed)

    def weight_spec(shape):
        # Grid-invariant operands: constant index_map + single buffer (no waste).
        return pl.BlockSpec(shape, lambda i: (0, 0), pipeline_mode=pl.Buffered(1))

    out_p = pl.pallas_call(
        film_kernel,
        out_shape=jax.ShapeDtypeStruct((Bp, Op), out_dtype),
        grid=grid,
        in_specs=[
            pl.BlockSpec((TB, Dp), lambda i: (i, 0)),   # film batch tile
            pl.BlockSpec((TB, Dp), lambda i: (i, 0)),   # to_be_film batch tile (f32)
            weight_spec((Dp, Dp + Op)),                 # fused [W_gamma | W_beta@W_out]
            weight_spec((1, Dp)),                       # b_gamma
            weight_spec((Dp, Op)),                      # W_out
            weight_spec((1, Op)),                       # c = b_beta@W_out + b_out
        ],
        out_specs=pl.BlockSpec((TB, Op), lambda i: (i, 0)),
        compiler_params=pltpu.CompilerParams(
            dimension_semantics=("parallel",),          # shard B tiles across cores
            vmem_limit_bytes=vmem_limit,
        ),
        cost_estimate=cost,
    )(film_p, tbf_p, wf, bg, wo, c)

    out = out_p[:B, :output_dim]
    return x, y, out


def init_params(key, input_dim, output_dim):
    """Deterministic nn.Linear-style init.

    Raw params match PyTorch shapes:
      fc     : weight (2*dim, input_dim), bias (2*dim,)
      fc_out : weight (output_dim, dim),  bias (output_dim,)
    Kernel params are pre-transposed, beta-folded through W_out (in f32, then
    bf16), zero-padded to lane-dense (multiples of 128) shapes.
    """
    dim = input_dim
    k1, k2, k3, k4 = jax.random.split(key, 4)
    lim1 = 1.0 / float(input_dim) ** 0.5
    w_fc = jax.random.uniform(k1, (2 * dim, input_dim), jnp.float32, -lim1, lim1)
    b_fc = jax.random.uniform(k2, (2 * dim,), jnp.float32, -lim1, lim1)
    lim2 = 1.0 / float(dim) ** 0.5
    w_out = jax.random.uniform(k3, (output_dim, dim), jnp.float32, -lim2, lim2)
    b_out = jax.random.uniform(k4, (output_dim,), jnp.float32, -lim2, lim2)
    raw = (w_fc, b_fc, w_out, b_out)

    Dp = _round_up(dim, 128)
    Op = _round_up(output_dim, 128)

    wg = w_fc[:dim].T                              # (D, D)
    wb = w_fc[dim:].T                              # (D, D)
    wo = w_out.T                                   # (D, O)
    wbo = wb @ wo                                  # (D, O) f32: fold beta through W_out
    c = b_fc[dim:] @ wo + b_out                    # (O,)  f32: folded bias

    def pad2(a, rows, cols):
        return jnp.pad(a, ((0, rows - a.shape[0]), (0, cols - a.shape[1])))

    wf = jnp.concatenate([pad2(wg, Dp, Dp), pad2(wbo, Dp, Op)],
                         axis=1).astype(jnp.bfloat16)          # (Dp, Dp+Op) bf16
    bg = pad2(b_fc[:dim].reshape(1, dim), 1, Dp)               # (1, Dp) f32
    wo_p = pad2(wo, Dp, Op).astype(jnp.bfloat16)               # (Dp, Op) bf16
    c_p = pad2(c.reshape(1, output_dim), 1, Op)                # (1, Op) f32

    return (wf, bg, wo_p, c_p), raw


def film_reference(x, y, raw_params, x_film=True):
    """Pure-JAX f32 reference mirroring the PyTorch forward exactly."""
    w_fc, b_fc, w_out, b_out = raw_params
    film = x if x_film else y
    to_be_film = y if x_film else x
    dim = x.shape[1]
    gb = film @ w_fc.T + b_fc
    gamma, beta = gb[:, :dim], gb[:, dim:]
    output = gamma * to_be_film + beta
    output = output @ w_out.T + b_out
    return x, y, output


if __name__ == "__main__":
    B = 8            # batch
    INPUT_DIM = 32   # fusion_input_dim == dim
    OUTPUT_DIM = 16  # fusion_output_dim
    X_FILM = True    # args.film_x_film

    key = jax.random.PRNGKey(0)
    kx, ky, kp = jax.random.split(key, 3)
    x = jax.random.normal(kx, (B, INPUT_DIM), jnp.float32)
    y = jax.random.normal(ky, (B, INPUT_DIM), jnp.float32)

    params, raw_params = init_params(kp, INPUT_DIM, OUTPUT_DIM)

    x_o, y_o, out = film_forward(x, y, params, OUTPUT_DIM, x_film=X_FILM)
    jax.block_until_ready(out)

    # correctness check against pure-JAX f32 reference (bf16 MXU weights +
    # beta-folding -> loosened tolerance)
    _, _, ref = film_reference(x, y, raw_params, x_film=X_FILM)
    assert out.shape == (B, OUTPUT_DIM)
    assert x_o.shape == x.shape and y_o.shape == y.shape
    assert jnp.allclose(out, ref, atol=5e-2, rtol=5e-2), "mismatch vs reference"

    print("KERNEL_OK")
</pallas_src>

<mosaic_0001>
module attributes {stable_mosaic.version = 11 : i64} {
  func.func @film_kernel(%arg0: i32, %arg1: memref<16x128xbf16, #tpu.memory_space<vmem>>, %arg2: memref<16x128xf32, #tpu.memory_space<vmem>>, %arg3: memref<128x256xbf16, #tpu.memory_space<vmem>>, %arg4: memref<1x128xf32, #tpu.memory_space<vmem>>, %arg5: memref<128x128xbf16, #tpu.memory_space<vmem>>, %arg6: memref<1x128xf32, #tpu.memory_space<vmem>>, %arg7: memref<16x128xf32, #tpu.memory_space<vmem>>) attributes {dimension_semantics = [#tpu.dimension_semantics<parallel>], iteration_bounds = array<i64: 1>, scalar_prefetch = 0 : i64, scratch_operands = 0 : i64, tpu.core_type = #tpu.core_type<tc>, window_params = [{transform_indices = @transform_0, window_bounds = array<i64: 16, 128>}, {transform_indices = @transform_1, window_bounds = array<i64: 16, 128>}, {pipeline_mode = #tpu.pipeline_mode<synchronous>, transform_indices = @transform_2, window_bounds = array<i64: 128, 256>}, {pipeline_mode = #tpu.pipeline_mode<synchronous>, transform_indices = @transform_3, window_bounds = array<i64: 1, 128>}, {pipeline_mode = #tpu.pipeline_mode<synchronous>, transform_indices = @transform_4, window_bounds = array<i64: 128, 128>}, {pipeline_mode = #tpu.pipeline_mode<synchronous>, transform_indices = @transform_5, window_bounds = array<i64: 1, 128>}, {transform_indices = @transform_6, window_bounds = array<i64: 16, 128>}]} {
    %c0 = arith.constant 0 : index
    %c0_0 = arith.constant 0 : index
    %0 = vector.load %arg1[%c0, %c0_0] : memref<16x128xbf16, #tpu.memory_space<vmem>>, vector<16x128xbf16>
    %c0_1 = arith.constant 0 : index
    %c0_2 = arith.constant 0 : index
    %1 = vector.load %arg3[%c0_1, %c0_2] : memref<128x256xbf16, #tpu.memory_space<vmem>>, vector<128x256xbf16>
    %cst = arith.constant dense<0.000000e+00> : vector<16x256xf32>
    %2 = tpu.matmul %0, %1, %cst {dimension_numbers = #tpu.dot_dimension_numbers<[1], [0], [0], [1], [0, 0, 1, 1], [], []>} : vector<16x128xbf16>, vector<128x256xbf16>, vector<16x256xf32> -> vector<16x256xf32>
    %3 = vector.extract_strided_slice %2 {offsets = [0, 0], sizes = [16, 128], strides = [1, 1]} : vector<16x256xf32> to vector<16x128xf32>
    %c0_3 = arith.constant 0 : index
    %c0_4 = arith.constant 0 : index
    %4 = vector.load %arg4[%c0_3, %c0_4] : memref<1x128xf32, #tpu.memory_space<vmem>>, vector<1x128xf32>
    %5 = vector.broadcast %4 : vector<1x128xf32> to vector<16x128xf32>
    %6 = arith.addf %3, %5 : vector<16x128xf32>
    %7 = vector.extract_strided_slice %2 {offsets = [0, 128], sizes = [16, 128], strides = [1, 1]} : vector<16x256xf32> to vector<16x128xf32>
    %c0_5 = arith.constant 0 : index
    %c0_6 = arith.constant 0 : index
    %8 = vector.load %arg2[%c0_5, %c0_6] : memref<16x128xf32, #tpu.memory_space<vmem>>, vector<16x128xf32>
    %9 = arith.mulf %6, %8 : vector<16x128xf32>
    %10 = arith.truncf %9 : vector<16x128xf32> to vector<16x128xbf16>
    %c0_7 = arith.constant 0 : index
    %c0_8 = arith.constant 0 : index
    %11 = vector.load %arg5[%c0_7, %c0_8] : memref<128x128xbf16, #tpu.memory_space<vmem>>, vector<128x128xbf16>
    %cst_9 = arith.constant dense<0.000000e+00> : vector<16x128xf32>
    %12 = tpu.matmul %10, %11, %cst_9 {dimension_numbers = #tpu.dot_dimension_numbers<[1], [0], [0], [1], [0, 0, 1, 1], [], []>} : vector<16x128xbf16>, vector<128x128xbf16>, vector<16x128xf32> -> vector<16x128xf32>
    %13 = arith.addf %12, %7 : vector<16x128xf32>
    %c0_10 = arith.constant 0 : index
    %c0_11 = arith.constant 0 : index
    %14 = vector.load %arg6[%c0_10, %c0_11] : memref<1x128xf32, #tpu.memory_space<vmem>>, vector<1x128xf32>
    %15 = vector.broadcast %14 : vector<1x128xf32> to vector<16x128xf32>
    %16 = arith.addf %13, %15 : vector<16x128xf32>
    %c0_12 = arith.constant 0 : index
    %c0_13 = arith.constant 0 : index
    %17 = vector.load %arg7[%c0_12, %c0_13] : memref<16x128xf32, #tpu.memory_space<vmem>>, vector<16x128xf32>
    tpu.vector_store %arg7[%c0_12, %c0_13], %16 {strides = array<i32>} : memref<16x128xf32, #tpu.memory_space<vmem>>, vector<16x128xf32>,
    return
  }
  func.func @transform_0(%arg0: i32) -> (i32, i32) {
    %c0_i32 = arith.constant 0 : i32
    %c0_i32_0 = arith.constant 0 : i32
    return %arg0, %c0_i32 : i32, i32
  }
  func.func @transform_1(%arg0: i32) -> (i32, i32) {
    %c0_i32 = arith.constant 0 : i32
    %c0_i32_0 = arith.constant 0 : i32
    return %arg0, %c0_i32 : i32, i32
  }
  func.func @transform_2(%arg0: i32) -> (i32, i32) {
    %c0_i32 = arith.constant 0 : i32
    %c0_i32_0 = arith.constant 0 : i32
    %c0_i32_1 = arith.constant 0 : i32
    return %c0_i32, %c0_i32_0 : i32, i32
  }
  func.func @transform_3(%arg0: i32) -> (i32, i32) {
    %c0_i32 = arith.constant 0 : i32
    %c0_i32_0 = arith.constant 0 : i32
    %c0_i32_1 = arith.constant 0 : i32
    return %c0_i32, %c0_i32_0 : i32, i32
  }
  func.func @transform_4(%arg0: i32) -> (i32, i32) {
    %c0_i32 = arith.constant 0 : i32
    %c0_i32_0 = arith.constant 0 : i32
    %c0_i32_1 = arith.constant 0 : i32
    return %c0_i32, %c0_i32_0 : i32, i32
  }
  func.func @transform_5(%arg0: i32) -> (i32, i32) {
    %c0_i32 = arith.constant 0 : i32
    %c0_i32_0 = arith.constant 0 : i32
    %c0_i32_1 = arith.constant 0 : i32
    return %c0_i32, %c0_i32_0 : i32, i32
  }
  func.func @transform_6(%arg0: i32) -> (i32, i32) {
    %c0_i32 = arith.constant 0 : i32
    %c0_i32_0 = arith.constant 0 : i32
    return %arg0, %c0_i32 : i32, i32
  }
}

</mosaic_0001>

<llo_original>
// kernel: tpu_custom_call.1
$region0: #{tpu_custom_call.1}
  #allocation0 [shape = 'u32[]', space=smem, size = 0x4, offset = 0x4, fixed_abs, tag = 'smem constant byte address 0x4 - core index']
  #allocation1 [shape = 'u32[144,128]{1,0:T(1,128)}', space=vmem, size = 0x12000, scoped, tag = 'internal scratch']
  %s0 = inlined_call_operand.hbm [shape: bf16[16,128], index: 0, kind: input, shape index: {}]
  %s1 = inlined_call_operand.hbm [shape: f32[16,128], index: 1, kind: input, shape index: {}]
  %s2 = inlined_call_operand.hbm [shape: bf16[128,256], index: 2, kind: input, shape index: {}]
  %s3 = inlined_call_operand.vmem [shape: f32[1,128], index: 3, kind: input, shape index: {}]
  %s4 = inlined_call_operand.hbm [shape: bf16[128,128], index: 4, kind: input, shape index: {}]
  %s5 = inlined_call_operand.vmem [shape: f32[1,128], index: 5, kind: input, shape index: {}]
  %s6 = inlined_call_operand.hbm [shape: f32[16,128], index: 6, kind: output, shape index: {}]
  %s7 = sld [smem:[#allocation0]]
  $region50: #{tpu_custom_call.1} parent=0
    _
  %s9 = ssub.s32 1, %s7
  %s10 = scalar_select 0, %s9, %s7
  $region1: #{tpu_custom_call.1} parent=0
    #allocation2 [shape = 'u8[4096]{0}', space=vmem, size = 0x1000, scoped, tag = 'input window, operand 0, single buffered']
    #allocation3 [shape = 's32[1]{0}', space=sflag, size = 0x4, scoped, tag = 'scoped memory for tpu_custom_call.1']
    #allocation4 [shape = 's32[1]{0}', space=sflag, size = 0x4, scoped, tag = 'scoped memory for tpu_custom_call.1']
    #allocation5 [shape = 'u8[8192]{0}', space=vmem, size = 0x2000, scoped, tag = 'input window, operand 1, single buffered']
    #allocation6 [shape = 's32[1]{0}', space=sflag, size = 0x4, scoped, tag = 'scoped memory for tpu_custom_call.1']
    #allocation7 [shape = 'u8[65536]{0}', space=vmem, size = 0x10000, scoped, tag = 'input window, operand 2, single buffered']
    #allocation8 [shape = 'u8[32768]{0}', space=vmem, size = 0x8000, scoped, tag = 'input window, operand 4, single buffered']
    #allocation9 [shape = 's32[1]{0}', space=sflag, size = 0x4, scoped, tag = 'scoped memory for tpu_custom_call.1']
    #allocation10 [shape = 'u8[8192]{0}', space=vmem, size = 0x2000, scoped, tag = 'output window, operand 0, single buffered']
    %11 = vsyncpa [#allocation3], 0
    %12 = vsyncpa [#allocation6], 0
    %13 = vsyncpa [#allocation9], 0
    %14 = vsyncpa [#allocation4], 0
    // Predicated region
    $region2: #{tpu_custom_call.1} parent=1 // pred_check
      _
    $region3: #{tpu_custom_call.1} parent=1 // pred_check_branch
      %16 = sbr.rel (0) target = $region5
    $region4: #{tpu_custom_call.1} parent=1 // pred_region
      %s18 = ssub.s32 128, 128
      %19 = vsyncadd [#allocation3], %s18
      %s20 = sshll.u32 [#allocation2], 4
      %s21 = int_to_ptr.vmem [resolvable:$true] %s20
      %26 = dma.hbm_to_vmem [thread:$0]  %s0, 128, %s21, [#allocation3], 64, 64, 4
    $region5: #{tpu_custom_call.1} parent=1 // pred_fallthru
      _
    // Predicated region
    $region6: #{tpu_custom_call.1} parent=1 // pred_check
      _
    $region7: #{tpu_custom_call.1} parent=1 // pred_check_branch
      %28 = sbr.rel (0) target = $region9
    $region8: #{tpu_custom_call.1} parent=1 // pred_region
      %s30 = ssub.s32 256, 256
      %31 = vsyncadd [#allocation6], %s30
      %s32 = sshll.u32 [#allocation5], 4
      %s33 = int_to_ptr.vmem [resolvable:$true] %s32
      %38 = dma.hbm_to_vmem [thread:$0]  %s1, 256, %s33, [#allocation6], 128, 128, 8
    $region9: #{tpu_custom_call.1} parent=1 // pred_fallthru
      _
    // Predicated region
    $region10: #{tpu_custom_call.1} parent=1 // pred_check
      _
    $region11: #{tpu_custom_call.1} parent=1 // pred_check_branch
      %40 = sbr.rel (0) target = $region13
    $region12: #{tpu_custom_call.1} parent=1 // pred_region
      %s42 = ssub.s32 2048, 2048
      %43 = vsyncadd [#allocation6], %s42
      %s44 = sshll.u32 [#allocation7], 4
      %s45 = int_to_ptr.vmem [resolvable:$true] %s44
      %50 = dma.hbm_to_vmem [thread:$0]  %s2, 2048, %s45, [#allocation6], 128, 128, 8
    $region13: #{tpu_custom_call.1} parent=1 // pred_fallthru
      _
    // Predicated region
    $region14: #{tpu_custom_call.1} parent=1 // pred_check
      _
    $region15: #{tpu_custom_call.1} parent=1 // pred_check_branch
      %52 = sbr.rel (0) target = $region17
    $region16: #{tpu_custom_call.1} parent=1 // pred_region
      _
    $region17: #{tpu_custom_call.1} parent=1 // pred_fallthru
      _
    // Predicated region
    $region18: #{tpu_custom_call.1} parent=1 // pred_check
      _
    $region19: #{tpu_custom_call.1} parent=1 // pred_check_branch
      %54 = sbr.rel (0) target = $region21
    $region20: #{tpu_custom_call.1} parent=1 // pred_region
      %s56 = ssub.s32 1024, 1024
      %57 = vsyncadd [#allocation9], %s56
      %s58 = sshll.u32 [#allocation8], 4
      %s59 = int_to_ptr.vmem [resolvable:$true] %s58
      %64 = dma.hbm_to_vmem [thread:$0]  %s4, 1024, %s59, [#allocation9], 64, 64, 4
    $region21: #{tpu_custom_call.1} parent=1 // pred_fallthru
      _
    // Predicated region
    $region22: #{tpu_custom_call.1} parent=1 // pred_check
      _
    $region23: #{tpu_custom_call.1} parent=1 // pred_check_branch
      %66 = sbr.rel (0) target = $region25
    $region24: #{tpu_custom_call.1} parent=1 // pred_region
      _
    $region25: #{tpu_custom_call.1} parent=1 // pred_fallthru
      _
    // Predicated region
    $region26: #{tpu_custom_call.1} parent=1 // pred_check
      _
    $region27: #{tpu_custom_call.1} parent=1 // pred_check_branch
      %68 = sbr.rel (0) target = $region29
    $region28: #{tpu_custom_call.1} parent=1 // pred_region
      %69 = dma.done [#allocation3], 128
    $region29: #{tpu_custom_call.1} parent=1 // pred_fallthru
      _
    // Predicated region
    $region30: #{tpu_custom_call.1} parent=1 // pred_check
      _
    $region31: #{tpu_custom_call.1} parent=1 // pred_check_branch
      %71 = sbr.rel (0) target = $region33
    $region32: #{tpu_custom_call.1} parent=1 // pred_region
      %72 = dma.done [#allocation6], 256
    $region33: #{tpu_custom_call.1} parent=1 // pred_fallthru
      _
    // Predicated region
    $region34: #{tpu_custom_call.1} parent=1 // pred_check
      _
    $region35: #{tpu_custom_call.1} parent=1 // pred_check_branch
      %74 = sbr.rel (0) target = $region37
    $region36: #{tpu_custom_call.1} parent=1 // pred_region
      %75 = dma.done [#allocation6], 2048
    $region37: #{tpu_custom_call.1} parent=1 // pred_fallthru
      _
    // Predicated region
    $region38: #{tpu_custom_call.1} parent=1 // pred_check
      _
    $region39: #{tpu_custom_call.1} parent=1 // pred_check_branch
      %77 = sbr.rel (0) target = $region41
    $region40: #{tpu_custom_call.1} parent=1 // pred_region
      %78 = dma.done [#allocation9], 1024
    $region41: #{tpu_custom_call.1} parent=1 // pred_fallthru
      _
    %v80 = vld [vmem:[#allocation2] sm:$0xf]
    %v81 = vld [vmem:[#allocation2 + $0x4] sm:$0xf]
    %v82 = vld [vmem:[#allocation7] sm:$0xff]
    %v83 = vld [vmem:[#allocation7 + $0x8] sm:$0xff]
    %v84 = vld [vmem:[#allocation7 + $0x10] sm:$0xff]
    %v85 = vld [vmem:[#allocation7 + $0x18] sm:$0xff]
    %v86 = vld [vmem:[#allocation7 + $0x20] sm:$0xff]
    %v87 = vld [vmem:[#allocation7 + $0x28] sm:$0xff]
    %v88 = vld [vmem:[#allocation7 + $0x30] sm:$0xff]
    %v89 = vld [vmem:[#allocation7 + $0x38] sm:$0xff]
    %v90 = vld [vmem:[#allocation7 + $0x40] sm:$0xff]
    %v91 = vld [vmem:[#allocation7 + $0x48] sm:$0xff]
    %v92 = vld [vmem:[#allocation7 + $0x50] sm:$0xff]
    %v93 = vld [vmem:[#allocation7 + $0x58] sm:$0xff]
    %v94 = vld [vmem:[#allocation7 + $0x60] sm:$0xff]
    %v95 = vld [vmem:[#allocation7 + $0x68] sm:$0xff]
    %v96 = vld [vmem:[#allocation7 + $0x70] sm:$0xff]
    %v97 = vld [vmem:[#allocation7 + $0x78] sm:$0xff]
    %v100 = vunpack.c.l.b16 %v80
    %v101 = vunpack.c.l.b16 %v81
    %v102 = vpack.c.b16 %v101, %v100
    %v120 = vunpack.c.l.b16 %v82
    %v121 = vunpack.c.h.b16 %v82
    %v122 = vunpack.c.l.b16 %v83
    %v123 = vunpack.c.h.b16 %v83
    %v124 = vunpack.c.l.b16 %v84
    %v125 = vunpack.c.h.b16 %v84
    %v126 = vunpack.c.l.b16 %v85
    %v127 = vunpack.c.h.b16 %v85
    %v128 = vunpack.c.l.b16 %v86
    %v129 = vunpack.c.h.b16 %v86
    %v130 = vunpack.c.l.b16 %v87
    %v131 = vunpack.c.h.b16 %v87
    %v132 = vunpack.c.l.b16 %v88
    %v133 = vunpack.c.h.b16 %v88
    %v134 = vunpack.c.l.b16 %v89
    %v135 = vunpack.c.h.b16 %v89
    %v136 = vunpack.c.l.b16 %v90
    %v137 = vunpack.c.h.b16 %v90
    %v138 = vunpack.c.l.b16 %v91
    %v139 = vunpack.c.h.b16 %v91
    %v140 = vunpack.c.l.b16 %v92
    %v141 = vunpack.c.h.b16 %v92
    %v142 = vunpack.c.l.b16 %v93
    %v143 = vunpack.c.h.b16 %v93
    %v144 = vunpack.c.l.b16 %v94
    %v145 = vunpack.c.h.b16 %v94
    %v146 = vunpack.c.l.b16 %v95
    %v147 = vunpack.c.h.b16 %v95
    %v148 = vunpack.c.l.b16 %v96
    %v149 = vunpack.c.h.b16 %v96
    %v150 = vunpack.c.l.b16 %v97
    %v151 = vunpack.c.h.b16 %v97
    %v152 = vpack.c.b16 %v122, %v120
    %v153 = vpack.c.b16 %v123, %v121
    %v154 = vpack.c.b16 %v126, %v124
    %v155 = vpack.c.b16 %v127, %v125
    %v156 = vpack.c.b16 %v130, %v128
    %v157 = vpack.c.b16 %v131, %v129
    %v158 = vpack.c.b16 %v134, %v132
    %v159 = vpack.c.b16 %v135, %v133
    %v160 = vpack.c.b16 %v138, %v136
    %v161 = vpack.c.b16 %v139, %v137
    %v162 = vpack.c.b16 %v142, %v140
    %v163 = vpack.c.b16 %v143, %v141
    %v164 = vpack.c.b16 %v146, %v144
    %v165 = vpack.c.b16 %v147, %v145
    %v166 = vpack.c.b16 %v150, %v148
    %v167 = vpack.c.b16 %v151, %v149
    %184 = vmatprep.subr.bf16.mxu0 %v167
    %185 = vmatpush1.bf16.msra.mxu0 %v166
    %186 = vmatprep.subr.bf16.mxu0 %v165
    %187 = vmatpush1.bf16.msra.mxu0 %v164
    %188 = vmatprep.subr.bf16.mxu0 %v163
    %189 = vmatpush1.bf16.msra.mxu0 %v162
    %190 = vmatprep.subr.bf16.mxu0 %v161
    %191 = vmatpush1.bf16.msra.mxu0 %v160
    %192 = vmatprep.subr.bf16.mxu0 %v159
    %193 = vmatpush1.bf16.msra.mxu0 %v158
    %194 = vmatprep.subr.bf16.mxu0 %v157
    %195 = vmatpush1.bf16.msra.mxu0 %v156
    %196 = vmatprep.subr.bf16.mxu0 %v155
    %197 = vmatpush1.bf16.msra.mxu0 %v154
    %198 = vmatprep.subr.bf16.mxu0 %v153
    %199 = vmatpush1.bf16.msra.mxu0 %v152
    %200 = vmatprep.subr.bf16.mxu0 0
    %201 = vmatpush2.bf16.msra.mxu0 0
    %202 = vmatprep.subr.bf16.mxu0 0
    %203 = vmatpush2.bf16.msra.mxu0 0
    %204 = vmatprep.subr.bf16.mxu0 0
    %205 = vmatpush2.bf16.msra.mxu0 0
    %206 = vmatprep.subr.bf16.mxu0 0
    %207 = vmatpush2.bf16.msra.mxu0 0
    %208 = vmatprep.subr.bf16.mxu0 0
    %209 = vmatpush2.bf16.msra.mxu0 0
    %210 = vmatprep.subr.bf16.mxu0 0
    %211 = vmatpush2.bf16.msra.mxu0 0
    %212 = vmatprep.subr.bf16.mxu0 0
    %213 = vmatpush2.bf16.msra.mxu0 0
    %214 = vmatprep.subr.bf16.mxu0 0
    %215 = vmatpush2.bf16.msra.mxu0 0
    %216 = vmatprep.mubr.bf16.mxu0 0
    %217 = vmatmul.mubr.bf16.gmra.mxu0 %v102
    %v218 = vpop.f32.mrf.mxu0
    %v219 = vadd.f32 0.0, %v218
    %v220 = vpop.f32.mrf.mxu0
    %v221 = vadd.f32 0.0, %v220
    %v222 = vpop.f32.mrf.mxu0
    %v223 = vadd.f32 0.0, %v222
    %v224 = vpop.f32.mrf.mxu0
    %v225 = vadd.f32 0.0, %v224
    %226 = vdwg.mxu0
    %v227 = vld [vmem:[%s3] sm:$0x1]
    %v229 = vlaneseq
    %v230 = vshrl.u32 %v229, 7
    %v231 = vsub.s32 0, %v230
    %v232 = vrot.slane %v227, %v231
    %v234 = vadd.f32 %v219, %v232
    %v235 = vadd.f32 %v223, %v232
    %v236 = vld [vmem:[#allocation5] sm:$0xff]
    %v237 = vld [vmem:[#allocation5 + $0x8] sm:$0xff]
    %v238 = vmul.f32 %v234, %v236
    %v239 = vmul.f32 %v235, %v237
    %v240 = vpack.c.bf16 %v239, %v238
    %v241 = vld [vmem:[#allocation8] sm:$0xf]
    %v242 = vld [vmem:[#allocation8 + $0x4] sm:$0xf]
    %v243 = vld [vmem:[#allocation8 + $0x8] sm:$0xf]
    %v244 = vld [vmem:[#allocation8 + $0xc] sm:$0xf]
    %v245 = vld [vmem:[#allocation8 + $0x10] sm:$0xf]
    %v246 = vld [vmem:[#allocation8 + $0x14] sm:$0xf]
    %v247 = vld [vmem:[#allocation8 + $0x18] sm:$0xf]
    %v248 = vld [vmem:[#allocation8 + $0x1c] sm:$0xf]
    %v249 = vld [vmem:[#allocation8 + $0x20] sm:$0xf]
    %v250 = vld [vmem:[#allocation8 + $0x24] sm:$0xf]
    %v251 = vld [vmem:[#allocation8 + $0x28] sm:$0xf]
    %v252 = vld [vmem:[#allocation8 + $0x2c] sm:$0xf]
    %v253 = vld [vmem:[#allocation8 + $0x30] sm:$0xf]
    %v254 = vld [vmem:[#allocation8 + $0x34] sm:$0xf]
    %v255 = vld [vmem:[#allocation8 + $0x38] sm:$0xf]
    %v256 = vld [vmem:[#allocation8 + $0x3c] sm:$0xf]
    %v273 = vunpack.c.l.b16 %v241
    %v274 = vunpack.c.l.b16 %v242
    %v275 = vunpack.c.l.b16 %v243
    %v276 = vunpack.c.l.b16 %v244
    %v277 = vunpack.c.l.b16 %v245
    %v278 = vunpack.c.l.b16 %v246
    %v279 = vunpack.c.l.b16 %v247
    %v280 = vunpack.c.l.b16 %v248
    %v281 = vunpack.c.l.b16 %v249
    %v282 = vunpack.c.l.b16 %v250
    %v283 = vunpack.c.l.b16 %v251
    %v284 = vunpack.c.l.b16 %v252
    %v285 = vunpack.c.l.b16 %v253
    %v286 = vunpack.c.l.b16 %v254
    %v287 = vunpack.c.l.b16 %v255
    %v288 = vunpack.c.l.b16 %v256
    %v289 = vpack.c.b16 %v274, %v273
    %v290 = vpack.c.b16 %v276, %v275
    %v291 = vpack.c.b16 %v278, %v277
    %v292 = vpack.c.b16 %v280, %v279
    %v293 = vpack.c.b16 %v282, %v281
    %v294 = vpack.c.b16 %v284, %v283
    %v295 = vpack.c.b16 %v286, %v285
    %v296 = vpack.c.b16 %v288, %v287
    %305 = vmatprep.subr.bf16.mxu0 0
    %306 = vmatpush1.bf16.msra.mxu0 %v296
    %307 = vmatprep.subr.bf16.mxu0 0
    %308 = vmatpush1.bf16.msra.mxu0 %v295
    %309 = vmatprep.subr.bf16.mxu0 0
    %310 = vmatpush1.bf16.msra.mxu0 %v294
    %311 = vmatprep.subr.bf16.mxu0 0
    %312 = vmatpush1.bf16.msra.mxu0 %v293
    %313 = vmatprep.subr.bf16.mxu0 0
    %314 = vmatpush1.bf16.msra.mxu0 %v292
    %315 = vmatprep.subr.bf16.mxu0 0
    %316 = vmatpush1.bf16.msra.mxu0 %v291
    %317 = vmatprep.subr.bf16.mxu0 0
    %318 = vmatpush1.bf16.msra.mxu0 %v290
    %319 = vmatprep.subr.bf16.mxu0 0
    %320 = vmatpush1.bf16.msra.mxu0 %v289
    %321 = vmatprep.subr.bf16.mxu0 0
    %322 = vmatpush2.bf16.msra.mxu0 0
    %323 = vmatprep.subr.bf16.mxu0 0
    %324 = vmatpush2.bf16.msra.mxu0 0
    %325 = vmatprep.subr.bf16.mxu0 0
    %326 = vmatpush2.bf16.msra.mxu0 0
    %327 = vmatprep.subr.bf16.mxu0 0
    %328 = vmatpush2.bf16.msra.mxu0 0
    %329 = vmatprep.subr.bf16.mxu0 0
    %330 = vmatpush2.bf16.msra.mxu0 0
    %331 = vmatprep.subr.bf16.mxu0 0
    %332 = vmatpush2.bf16.msra.mxu0 0
    %333 = vmatprep.subr.bf16.mxu0 0
    %334 = vmatpush2.bf16.msra.mxu0 0
    %335 = vmatprep.subr.bf16.mxu0 0
    %336 = vmatpush2.bf16.msra.mxu0 0
    %337 = vmatprep.mubr.bf16.mxu0 0
    %338 = vmatmul.mubr.bf16.gmra.mxu0 %v240
    %v339 = vpop.f32.mrf.mxu0
    %v340 = vadd.f32 %v221, %v339
    %v341 = vpop.f32.mrf.mxu0
    %v342 = vpop.f32.mrf.mxu0
    %v343 = vadd.f32 %v225, %v342
    %v344 = vpop.f32.mrf.mxu0
    %345 = vdwg.mxu0
    %v346 = vld [vmem:[%s5] sm:$0x1]
    %v348 = vlaneseq
    %v349 = vshrl.u32 %v348, 7
    %v350 = vsub.s32 0, %v349
    %v351 = vrot.slane %v346, %v350
    %v353 = vadd.f32 %v340, %v351
    %v354 = vadd.f32 %v343, %v351
    %355 = vst [vmem:[#allocation10] sm:$0xff] %v353
    %356 = vst [vmem:[#allocation10 + $0x8] sm:$0xff] %v354
    // Predicated region
    $region42: #{tpu_custom_call.1} parent=1 // pred_check
      _
    $region43: #{tpu_custom_call.1} parent=1 // pred_check_branch
      %358 = sbr.rel (0) target = $region45
    $region44: #{tpu_custom_call.1} parent=1 // pred_region
      %s360 = ssub.s32 256, 256
      %361 = vsyncadd [#allocation4], %s360
      %s362 = sshll.u32 [#allocation10], 4
      %s363 = int_to_ptr.vmem [resolvable:$true] %s362
      %368 = dma.vmem_to_hbm [thread:$0]  %s363, 256, %s6, [#allocation4], 128, 128, 8
    $region45: #{tpu_custom_call.1} parent=1 // pred_fallthru
      _
    // Predicated region
    $region46: #{tpu_custom_call.1} parent=1 // pred_check
      _
    $region47: #{tpu_custom_call.1} parent=1 // pred_check_branch
      %370 = sbr.rel (0) target = $region49
    $region48: #{tpu_custom_call.1} parent=1 // pred_region
      %371 = dma.done [#allocation4], 256
    $region49: #{tpu_custom_call.1} parent=1 // pred_fallthru
      _
    %372 = vsyncpa [#allocation3], 1
    %373 = vsyncpa [#allocation6], 1
    %374 = vsyncpa [#allocation9], 1
    %375 = vsyncpa [#allocation4], 1

</llo_original>
